<compile_context>
chip_gen: v7x
topology: tpu7x:2x2x1
jax: 0.10.0
libtpu: 0.0.40
codegen_flags: <defaults>
</compile_context>

<pallas_src>
import functools
import math

import jax
import jax.numpy as jnp
from jax.experimental import pallas as pl
from jax.experimental.pallas import tpu as pltpu


def _out_proj_kernel(x_ref, w_ref, b_ref, o_ref, *, ltr: bool):
    # x_ref: (tm, Dr) row tile; w_ref: (Dr, r) weight; b_ref: (1,) bias in SMEM;
    # o_ref: (tm, r) output block.
    y = jnp.dot(x_ref[...], w_ref[...], preferred_element_type=jnp.float32)
    y = y + b_ref[0]
    if not ltr:
        y = jnp.tanh(y)                 # EUP; hidden under the HBM-bound DMA
    o_ref[...] = y.astype(o_ref.dtype)


def output_projection(x, weight, bias, *, ltr: bool, tile_bytes: int = 8 << 20):
    """x: (B, S, D); weight: (1, D) (PyTorch nn.Linear layout); bias: (1,)."""
    B, S, D = x.shape
    M = B * S
    itemsize = jnp.dtype(x.dtype).itemsize

    # ---- Lane-density folding (review item 6) -------------------------------
    # If D is not a multiple of 128 lanes, view x as (M/r, r*D) with
    # r*D % 128 == 0 and expand the weight once into a block-diagonal (r*D, r)
    # matrix.  x itself is never padded or copied.
    r = 1
    if D % 128 != 0:
        r_cand = math.lcm(D, 128) // D
        wr_bytes = (r_cand * D) * r_cand * itemsize
        if r_cand > 1 and M % r_cand == 0 and wr_bytes <= (2 << 20):
            r = r_cand
    Dr = r * D                 # folded row width (multiple of 128 when folded)
    M2 = M // r                # folded row count
    out_cols = r

    x2 = x.reshape(M2, Dr)
    if r == 1:
        w_mat = weight.reshape(D, 1).astype(x.dtype)
    else:
        eye = jnp.eye(r, dtype=x.dtype)                       # (r, r)
        w_mat = (weight.astype(x.dtype).reshape(1, D, 1) * eye[:, None, :])
        w_mat = w_mat.reshape(Dr, r)                          # block-diagonal

    # ---- Row-tile selection (review items 2, 4, 7) ---------------------------
    sub = (8 * 4) // itemsize                  # sublane multiple: 8 / 16 / 32
    row_bytes = pl.cdiv(Dr, 128) * 128 * itemsize
    tm_cap = max(sub, (tile_bytes // row_bytes) // sub * sub)
    tm = min(tm_cap, pl.cdiv(M2, sub) * sub)
    if tm >= M2:
        tm = M2                                # single full block, no ragged tail
    num_tiles = pl.cdiv(M2, tm)
    if num_tiles == 1 and M2 >= 2 * sub:
        # v7x megacore: make sure the "parallel" axis has >= 2 steps.
        tm = pl.cdiv(pl.cdiv(M2, 2), sub) * sub
        num_tiles = pl.cdiv(M2, tm)

    # ---- VMEM budget (review item 3) -----------------------------------------
    lane_pad = lambda n: pl.cdiv(n, 128) * 128
    vmem_bytes = (2 * tm * (lane_pad(Dr) + lane_pad(out_cols)) * itemsize
                  + 2 * lane_pad(Dr) * lane_pad(out_cols) * itemsize
                  + (2 << 20))                 # slack for Mosaic internal scratch
    vmem_limit = int(min(max(vmem_bytes, 16 << 20), 40 << 20))

    kernel = functools.partial(_out_proj_kernel, ltr=ltr)

    out = pl.pallas_call(
        kernel,
        out_shape=jax.ShapeDtypeStruct((M2, out_cols), x.dtype),
        grid_spec=pltpu.PrefetchScalarGridSpec(
            num_scalar_prefetch=0,
            grid=(num_tiles,),
            in_specs=[
                pl.BlockSpec((tm, Dr), lambda i: (i, 0)),           # x row tile
                pl.BlockSpec((Dr, out_cols), lambda i: (0, 0)),     # weight (grid-invariant)
                pl.BlockSpec(memory_space=pltpu.MemorySpace.SMEM),  # bias scalar
            ],
            out_specs=pl.BlockSpec((tm, out_cols), lambda i: (i, 0)),
        ),
        compiler_params=pltpu.CompilerParams(
            dimension_semantics=("parallel",),
            vmem_limit_bytes=vmem_limit,
        ),
        cost_estimate=pl.CostEstimate(
            flops=2 * M * D,
            transcendentals=0 if ltr else M,
            bytes_accessed=(M * D + M + Dr * out_cols + 1) * itemsize,
        ),
    )(x2, w_mat, bias)

    # (M2, r) in row-major order == original (B*S) row order; ragged-tail rows
    # (if any) were masked at writeback and never reached HBM.
    return out.reshape(B, S)


if __name__ == "__main__":
    # Small shapes consistent with the module's forward: (batch, seq_len, d_model)
    batch, seq_len, d_model = 2, 8, 32

    key = jax.random.PRNGKey(0)
    kx, kw, kb = jax.random.split(key, 3)

    x = jax.random.normal(kx, (batch, seq_len, d_model), dtype=jnp.float32)
    # nn.Linear(d_model, 1): weight (1, d_model), bias (1,).
    weight = jax.random.normal(kw, (1, d_model), dtype=jnp.float32) * (1.0 / jnp.sqrt(d_model))
    bias = jax.random.normal(kb, (1,), dtype=jnp.float32) * 0.01

    ok = True
    for ltr in (True, False):
        out = jax.block_until_ready(output_projection(x, weight, bias, ltr=ltr))

        # Pure-JAX reference.
        ref = jnp.einsum("bsd,d->bs", x, weight[0]) + bias[0]
        if not ltr:
            ref = jnp.tanh(ref)

        if out.shape != (batch, seq_len):
            ok = False
        if not jnp.allclose(out, ref, atol=1e-5, rtol=1e-5):
            ok = False

    if ok:
        print("KERNEL_OK")
</pallas_src>

<mosaic_0001>
module attributes {stable_mosaic.version = 11 : i64} {
  func.func @_out_proj_kernel(%arg0: i32, %arg1: memref<4x128xf32, #tpu.memory_space<vmem>>, %arg2: memref<128x4xf32, #tpu.memory_space<vmem>>, %arg3: memref<1xf32, #tpu.memory_space<smem>>, %arg4: memref<4x4xf32, #tpu.memory_space<vmem>>) attributes {dimension_semantics = [#tpu.dimension_semantics<parallel>], iteration_bounds = array<i64: 1>, scalar_prefetch = 0 : i64, scratch_operands = 0 : i64, tpu.core_type = #tpu.core_type<tc>, window_params = [{transform_indices = @transform_0, window_bounds = array<i64: 4, 128>}, {pipeline_mode = #tpu.pipeline_mode<synchronous>, transform_indices = @transform_1, window_bounds = array<i64: 128, 4>}, {transform_indices = @transform_2, window_bounds = array<i64: 1>}, {transform_indices = @transform_3, window_bounds = array<i64: 4, 4>}]} {
    %c0 = arith.constant 0 : index
    %c0_0 = arith.constant 0 : index
    %0 = vector.load %arg1[%c0, %c0_0] : memref<4x128xf32, #tpu.memory_space<vmem>>, vector<4x128xf32>
    %c0_1 = arith.constant 0 : index
    %c0_2 = arith.constant 0 : index
    %1 = vector.load %arg2[%c0_1, %c0_2] : memref<128x4xf32, #tpu.memory_space<vmem>>, vector<128x4xf32>
    %cst = arith.constant dense<0.000000e+00> : vector<4x4xf32>
    %2 = tpu.matmul %0, %1, %cst {dimension_numbers = #tpu.dot_dimension_numbers<[1], [0], [0], [1], [0, 0, 1, 1], [], []>} : vector<4x128xf32>, vector<128x4xf32>, vector<4x4xf32> -> vector<4x4xf32>
    %c0_3 = arith.constant 0 : index
    %3 = memref.load %arg3[%c0_3] : memref<1xf32, #tpu.memory_space<smem>>
    %4 = vector.broadcast %3 : f32 to vector<4x4xf32>
    %5 = arith.addf %2, %4 : vector<4x4xf32>
    %c0_4 = arith.constant 0 : index
    %c0_5 = arith.constant 0 : index
    %6 = vector.load %arg4[%c0_4, %c0_5] : memref<4x4xf32, #tpu.memory_space<vmem>>, vector<4x4xf32>
    tpu.vector_store %arg4[%c0_4, %c0_5], %5 {strides = array<i32>} : memref<4x4xf32, #tpu.memory_space<vmem>>, vector<4x4xf32>,
    return
  }
  func.func @transform_0(%arg0: i32) -> (i32, i32) {
    %c0_i32 = arith.constant 0 : i32
    %c0_i32_0 = arith.constant 0 : i32
    return %arg0, %c0_i32 : i32, i32
  }
  func.func @transform_1(%arg0: i32) -> (i32, i32) {
    %c0_i32 = arith.constant 0 : i32
    %c0_i32_0 = arith.constant 0 : i32
    %c0_i32_1 = arith.constant 0 : i32
    return %c0_i32, %c0_i32_0 : i32, i32
  }
  func.func @transform_2(%arg0: i32) -> i32 {
    %c0_i32 = arith.constant 0 : i32
    %c0_i32_0 = arith.constant 0 : i32
    return %c0_i32 : i32
  }
  func.func @transform_3(%arg0: i32) -> (i32, i32) {
    %c0_i32 = arith.constant 0 : i32
    %c0_i32_0 = arith.constant 0 : i32
    return %arg0, %c0_i32 : i32, i32
  }
}

</mosaic_0001>

<llo_original>
// kernel: tpu_custom_call.1
$region0: #{tpu_custom_call.1}
  #allocation0 [shape = 'u32[]', space=smem, size = 0x4, offset = 0x4, fixed_abs, tag = 'smem constant byte address 0x4 - core index']
  #allocation1 [shape = 'u32[144,128]{1,0:T(1,128)}', space=vmem, size = 0x12000, scoped, tag = 'internal scratch']
  #allocation2 [shape = 'f32[1]{0:T(128)S(6)}', space=smem, size = 0x200, scoped, tag = 'scoped memory for tpu_custom_call.1']
  %s0 = inlined_call_operand.vmem [shape: f32[4,128], index: 0, kind: input, shape index: {}]
  %s1 = inlined_call_operand.vmem [shape: f32[128,4], index: 1, kind: input, shape index: {}]
  %s2 = inlined_call_operand.<no memory space> [shape: f32[1], index: 2, kind: input, shape index: {}]
  %s3 = inlined_call_operand.hbm [shape: f32[4,4], index: 3, kind: output, shape index: {}]
  %s4 = sld [smem:[#allocation0]]
  $region22: #{tpu_custom_call.1} parent=0
    _
  %s6 = ssub.s32 1, %s4
  %s7 = scalar_select 0, %s6, %s4
  %8 = sst [smem:[#allocation2]] %s2
  $region1: #{tpu_custom_call.1} parent=0
    #allocation3 [shape = 'u8[2048]{0}', space=vmem, size = 0x800, scoped, tag = 'output window, operand 0, single buffered']
    #allocation4 [shape = 's32[1]{0}', space=sflag, size = 0x4, scoped, tag = 'scoped memory for tpu_custom_call.1']
    %9 = vsyncpa [#allocation4], 0
    // Predicated region
    $region2: #{tpu_custom_call.1} parent=1 // pred_check
      _
    $region3: #{tpu_custom_call.1} parent=1 // pred_check_branch
      %11 = sbr.rel (0) target = $region5
    $region4: #{tpu_custom_call.1} parent=1 // pred_region
      _
    $region5: #{tpu_custom_call.1} parent=1 // pred_fallthru
      _
    // Predicated region
    $region6: #{tpu_custom_call.1} parent=1 // pred_check
      _
    $region7: #{tpu_custom_call.1} parent=1 // pred_check_branch
      %13 = sbr.rel (0) target = $region9
    $region8: #{tpu_custom_call.1} parent=1 // pred_region
      _
    $region9: #{tpu_custom_call.1} parent=1 // pred_fallthru
      _
    // Predicated region
    $region10: #{tpu_custom_call.1} parent=1 // pred_check
      _
    $region11: #{tpu_custom_call.1} parent=1 // pred_check_branch
      %15 = sbr.rel (0) target = $region13
    $region12: #{tpu_custom_call.1} parent=1 // pred_region
      _
    $region13: #{tpu_custom_call.1} parent=1 // pred_fallthru
      _
    %v16 = vld [vmem:[%s0] sm:$0xf]
    %v17 = vld [vmem:[%s1] sm:$0xff]
    %v18 = vld [vmem:[%s1 + $0x8] sm:$0xff]
    %v19 = vld [vmem:[%s1 + $0x10] sm:$0xff]
    %v20 = vld [vmem:[%s1 + $0x18] sm:$0xff]
    %v21 = vld [vmem:[%s1 + $0x20] sm:$0xff]
    %v22 = vld [vmem:[%s1 + $0x28] sm:$0xff]
    %v23 = vld [vmem:[%s1 + $0x30] sm:$0xff]
    %v24 = vld [vmem:[%s1 + $0x38] sm:$0xff]
    %v25 = vld [vmem:[%s1 + $0x40] sm:$0xff]
    %v26 = vld [vmem:[%s1 + $0x48] sm:$0xff]
    %v27 = vld [vmem:[%s1 + $0x50] sm:$0xff]
    %v28 = vld [vmem:[%s1 + $0x58] sm:$0xff]
    %v29 = vld [vmem:[%s1 + $0x60] sm:$0xff]
    %v30 = vld [vmem:[%s1 + $0x68] sm:$0xff]
    %v31 = vld [vmem:[%s1 + $0x70] sm:$0xff]
    %v32 = vld [vmem:[%s1 + $0x78] sm:$0xff]
    %s33 = sld [smem:[#allocation2]]
    %v34 = vstv %s33
    %35 = vmatprep.subr.mxu0 0.0
    %36 = vmatpush1.msra.mxu0 %v17
    %37 = vmatprep.subr.mxu0 0.0
    %38 = vmatpush1.msra.mxu0 %v18
    %39 = vmatprep.subr.mxu0 0.0
    %40 = vmatpush1.msra.mxu0 %v19
    %41 = vmatprep.subr.mxu0 0.0
    %42 = vmatpush1.msra.mxu0 %v20
    %43 = vmatprep.subr.mxu0 0.0
    %44 = vmatpush1.msra.mxu0 %v21
    %45 = vmatprep.subr.mxu0 0.0
    %46 = vmatpush1.msra.mxu0 %v22
    %47 = vmatprep.subr.mxu0 0.0
    %48 = vmatpush1.msra.mxu0 %v23
    %49 = vmatprep.subr.mxu0 0.0
    %50 = vmatpush1.msra.mxu0 %v24
    %51 = vmatprep.subr.mxu0 0.0
    %52 = vmatpush1.msra.mxu0 %v25
    %53 = vmatprep.subr.mxu0 0.0
    %54 = vmatpush1.msra.mxu0 %v26
    %55 = vmatprep.subr.mxu0 0.0
    %56 = vmatpush1.msra.mxu0 %v27
    %57 = vmatprep.subr.mxu0 0.0
    %58 = vmatpush1.msra.mxu0 %v28
    %59 = vmatprep.subr.mxu0 0.0
    %60 = vmatpush1.msra.mxu0 %v29
    %61 = vmatprep.subr.mxu0 0.0
    %62 = vmatpush1.msra.mxu0 %v30
    %63 = vmatprep.subr.mxu0 0.0
    %64 = vmatpush1.msra.mxu0 %v31
    %65 = vmatprep.subr.mxu0 0.0
    %66 = vmatpush1.msra.mxu0 %v32
    %67 = vmatprep.subr.mxu0 0.0
    %68 = vmatpush1.msra.mxu0 0.0
    %69 = vmatprep.subr.mxu0 0.0
    %70 = vmatpush1.msra.mxu0 0.0
    %71 = vmatprep.subr.mxu0 0.0
    %72 = vmatpush1.msra.mxu0 0.0
    %73 = vmatprep.subr.mxu0 0.0
    %74 = vmatpush1.msra.mxu0 0.0
    %75 = vmatprep.subr.mxu0 0.0
    %76 = vmatpush1.msra.mxu0 0.0
    %77 = vmatprep.subr.mxu0 0.0
    %78 = vmatpush1.msra.mxu0 0.0
    %79 = vmatprep.subr.mxu0 0.0
    %80 = vmatpush1.msra.mxu0 0.0
    %81 = vmatprep.subr.mxu0 0.0
    %82 = vmatpush1.msra.mxu0 0.0
    %83 = vmatprep.subr.mxu0 0.0
    %84 = vmatpush1.msra.mxu0 0.0
    %85 = vmatprep.subr.mxu0 0.0
    %86 = vmatpush1.msra.mxu0 0.0
    %87 = vmatprep.subr.mxu0 0.0
    %88 = vmatpush1.msra.mxu0 0.0
    %89 = vmatprep.subr.mxu0 0.0
    %90 = vmatpush1.msra.mxu0 0.0
    %91 = vmatprep.subr.mxu0 0.0
    %92 = vmatpush1.msra.mxu0 0.0
    %93 = vmatprep.subr.mxu0 0.0
    %94 = vmatpush1.msra.mxu0 0.0
    %95 = vmatprep.subr.mxu0 0.0
    %96 = vmatpush1.msra.mxu0 0.0
    %97 = vmatprep.subr.mxu0 0.0
    %98 = vmatpush1.msra.mxu0 0.0
    %99 = vmatprep.mubr.f32.mxu0 0.0
    %100 = vmatmul.mubr.f32.gmra.mrb[0].mxu0 %v16
    %v101 = vpop.f32.mrb[0].mxu0
    %v102 = vadd.f32 %v34, %v101
    %v103 = vpop.f32.mrb[0].mxu0
    %104 = vdwg.mxu0
    %vm105 = vcmask 27648
    %106 = vst.msk [vmem:[#allocation3] sm:$0xf] %vm105, %v102
    // Predicated region
    $region14: #{tpu_custom_call.1} parent=1 // pred_check
      _
    $region15: #{tpu_custom_call.1} parent=1 // pred_check_branch
      %108 = sbr.rel (0) target = $region17
    $region16: #{tpu_custom_call.1} parent=1 // pred_region
      %s110 = ssub.s32 64, 64
      %111 = vsyncadd [#allocation4], %s110
      %s113 = sshll.u32 [#allocation3], 4
      %s114 = int_to_ptr.vmem [resolvable:$true] %s113
      %116 = dma.vmem_to_hbm [thread:$0]  %s114, 64, %s3, [#allocation4]
    $region17: #{tpu_custom_call.1} parent=1 // pred_fallthru
      _
    // Predicated region
    $region18: #{tpu_custom_call.1} parent=1 // pred_check
      _
    $region19: #{tpu_custom_call.1} parent=1 // pred_check_branch
      %118 = sbr.rel (0) target = $region21
    $region20: #{tpu_custom_call.1} parent=1 // pred_region
      %119 = dma.done [#allocation4], 64
    $region21: #{tpu_custom_call.1} parent=1 // pred_fallthru
      _
    %120 = vsyncpa [#allocation4], 1

</llo_original>
